<compile_context>
chip_gen: v7x
topology: tpu7x:2x2x1
jax: 0.10.0
libtpu: 0.0.40
codegen_flags: <defaults>
</compile_context>

<pallas_src>
import math

import jax
import jax.numpy as jnp
from jax.experimental import pallas as pl
from jax.experimental.pallas import tpu as pltpu


# ---------------------------------------------------------------------------
# Hardware probes (safe fallbacks if the query API is unavailable)
# ---------------------------------------------------------------------------
def _round_up(x, m):
    return ((x + m - 1) // m) * m


def _vmem_capacity_bytes():
    try:
        info = pltpu.get_tpu_info()
        cap = int(getattr(info, "vmem_capacity_bytes", 0) or 0)
        if cap > 0:
            return cap
    except Exception:
        pass
    return 64 * 1024 * 1024          # conservative: v7x per-TC VMEM


def _default_compute_dtype():
    # bf16 VPU/EUP exists on v6e/v7x; on v5e/older it would only add casts.
    try:
        kind = jax.devices()[0].device_kind.lower()
    except Exception:
        return jnp.float32
    if ("v6" in kind) or ("v7" in kind) or ("trillium" in kind):
        return jnp.bfloat16
    return jnp.float32


# ---------------------------------------------------------------------------
# Kernel
# ---------------------------------------------------------------------------
def _make_kernel(*, has_bias, shift, block_rows, compute_dtype, mxu_dtype, sum_lane):
    def kernel(*refs):
        if has_bias:
            f1_ref, f2_ref, bias_ref, xw_ref, o_ref = refs
        else:
            f1_ref, f2_ref, xw_ref, o_ref = refs
            bias_ref = None

        # f1 is resident [n_pad, 1]; slice this tile's rows (no per-step 1-lane DMA).
        start = pl.multiple_of(pl.program_id(0) * block_rows, 8)
        f1 = f1_ref[pl.ds(start, block_rows), :].astype(compute_dtype)   # [TN, 1]
        f2 = f2_ref[...].astype(compute_dtype)                           # [1,  n]

        logits = jnp.tanh(f1 + f2)                                       # [TN, n]
        if bias_ref is not None:
            logits = logits + bias_ref[...].astype(compute_dtype)

        if shift is not None:
            # tanh <= 1 (+ known bias upper bound) -> constant shift, no XLU row-max.
            e = jnp.exp(logits - shift)
        else:
            e = jnp.exp(logits - jnp.max(logits, axis=-1, keepdims=True))

        # Unnormalized coef @ (x @ W^T); the ones column of xw makes column `sum_lane`
        # hold the softmax denominator (row-sum of e) for free on the MXU.
        acc = jnp.dot(e.astype(mxu_dtype), xw_ref[...],
                      preferred_element_type=jnp.float32)                # [TN, P]
        if sum_lane is not None:
            denom = acc[:, sum_lane:sum_lane + 1]                        # [TN, 1]
        else:
            denom = jnp.sum(e.astype(jnp.float32), axis=-1, keepdims=True)

        o_ref[...] = jnp.tanh(
            acc * pl.reciprocal(denom, approx=True)).astype(o_ref.dtype)

    return kernel


# ---------------------------------------------------------------------------
# Wrapper
# ---------------------------------------------------------------------------
def adaptive_breadth_func(x, ws_w, wd_w, w_w, v_w, bias_mtx=None, *,
                          bias_upper_bound=None, block_rows=None,
                          compute_dtype=None, mxu_dtype=jnp.bfloat16):
    """GeniePath AdaptiveBeadthFunc forward.

    x:                 [n, in_dim]
    ws_w/wd_w/w_w:     torch-layout weights [out_dim, in_dim] (Linear, bias=False)
    v_w:               [1, in_dim]
    bias_mtx:          optional [n, n] additive attention bias / mask
    bias_upper_bound:  optional Python float upper bound on bias_mtx (e.g. 0.0 for
                       0/-inf adjacency masks); enables the constant-shift softmax.
    Note: fully-masked rows (entire bias row -inf) yield NaN, same as the reference
    softmax.
    """
    n, in_dim = x.shape
    out_dim = w_w.shape[0]
    assert ws_w.shape == (out_dim, in_dim) and wd_w.shape == (out_dim, in_dim)
    assert v_w.shape == (1, in_dim)
    # The torch module only type-checks when out_dim == in_dim (v is Linear(in_dim, 1)
    # applied to Ws(x), which has out_dim features).
    assert out_dim == in_dim, "AdaptiveBeadthFunc requires out_dim == in_dim"

    if compute_dtype is None:
        compute_dtype = _default_compute_dtype()

    xf = x.astype(jnp.float32)
    # Fold v into Ws / Wd:  v(Ws(x)) = x @ (Ws^T v^T).
    vs = ws_w.T.astype(jnp.float32) @ v_w.T.astype(jnp.float32)
    vd = wd_w.T.astype(jnp.float32) @ v_w.T.astype(jnp.float32)
    f1 = xf @ vs                          # [n, 1]  per-query logits (resident, sliced)
    f2_row = (xf @ vd).T                  # [1, n]  per-key logits (resident)
    # Fold W into x:  W(coef @ x) == coef @ (x @ W^T).
    xw = xf @ w_w.T.astype(jnp.float32)   # [n, out_dim]

    # Lane-dense output padding; if a spare padded lane exists, turn it into a
    # "ones column" so the softmax denominator is produced by the matmul itself.
    p = max(128, _round_up(out_dim, 128))
    sum_lane = out_dim if p > out_dim else None
    if p != out_dim:
        xw = jnp.pad(xw, ((0, 0), (0, p - out_dim)))
    if sum_lane is not None:
        xw = xw.at[:, sum_lane].set(1.0)
    xw = xw.astype(mxu_dtype)

    # Softmax shift: tanh <= 1, so a constant shift is exact without a bias or with a
    # bias of known upper bound; otherwise keep the per-row max (safe fallback).
    if bias_mtx is None:
        shift = 1.0
    elif bias_upper_bound is not None:
        shift = 1.0 + float(bias_upper_bound)
    else:
        shift = None

    # Generation-aware VMEM sizing (v7x: 64 MiB/TC, v5e/v6e: 128 MiB).
    vmem_cap = _vmem_capacity_bytes()
    vmem_limit = int(min((vmem_cap * 3) // 4, 112 * 1024 * 1024))
    out_bytes = jnp.dtype(x.dtype).itemsize
    mxu_bytes = jnp.dtype(mxu_dtype).itemsize
    cd_bytes = jnp.dtype(compute_dtype).itemsize
    if block_rows is None:
        # Double-buffered residents: xw [n,P] mxu, f2 [1,n] f32, f1 [n_pad,1] f32.
        resident = 2 * (n * p * mxu_bytes + n * 4 + (n + 2048) * 4)
        # Per-row cost of a tile: output double-buffer + live logits/e/coef temporaries.
        per_row = 2 * p * out_bytes + (2 * cd_bytes + mxu_bytes) * n
        if bias_mtx is not None:
            per_row += 2 * n * 2              # bf16 bias double-buffer
        budget = vmem_limit - resident - 2 * 1024 * 1024
        block_rows = max(8, min(2048, budget // max(per_row, 1)))
    # At least 2 grid steps whenever possible so the row grid shards across v7x's 2 TCs.
    if n >= 16:
        block_rows = min(block_rows, _round_up(-(-n // 2), 8))
    block_rows = min(block_rows, n)
    if block_rows != n:
        block_rows = max(8, (block_rows // 8) * 8)   # sublane alignment
    grid_len = pl.cdiv(n, block_rows)
    grid = (grid_len,)

    # f1 is tiny; keep it fully resident (padded to a whole number of tiles) and slice
    # per tile inside the kernel -> no 1-lane-wide DMA descriptor per grid step.
    n_pad = grid_len * block_rows
    if n_pad != n:
        f1 = jnp.pad(f1, ((0, n_pad - n), (0, 0)))

    resident_spec = lambda shape: pl.BlockSpec(shape, lambda i: (0,) * len(shape))
    rowtile = lambda shape: pl.BlockSpec(shape, lambda i: (i,) + (0,) * (len(shape) - 1))

    in_specs = [resident_spec((n_pad, 1)),    # f1 (resident)
                resident_spec((1, n))]        # f2 row (resident)
    args = [f1, f2_row]
    if bias_mtx is not None:
        # Stream the O(n^2) bias in bf16: it is the HBM roofline of this kernel.
        if bias_mtx.dtype != jnp.bfloat16:
            bias_mtx = bias_mtx.astype(jnp.bfloat16)
        in_specs.append(rowtile((block_rows, n)))
        args.append(bias_mtx)
    in_specs.append(resident_spec((n, p)))    # x @ W^T (+ ones column), resident
    args.append(xw)

    kernel = _make_kernel(has_bias=bias_mtx is not None, shift=shift,
                          block_rows=block_rows, compute_dtype=compute_dtype,
                          mxu_dtype=mxu_dtype, sum_lane=sum_lane)

    out = pl.pallas_call(
        kernel,
        out_shape=jax.ShapeDtypeStruct((n, p), x.dtype),
        grid=grid,
        in_specs=in_specs,
        out_specs=rowtile((block_rows, p)),
        compiler_params=pltpu.CompilerParams(
            dimension_semantics=("parallel",),
            vmem_limit_bytes=vmem_limit),
    )(*args)
    return out[:, :out_dim]


# ---------------------------------------------------------------------------
# Reference + demo
# ---------------------------------------------------------------------------
def _xavier_uniform(key, shape):
    fan_out, fan_in = shape
    bound = math.sqrt(6.0 / (fan_in + fan_out))
    return jax.random.uniform(key, shape, jnp.float32, -bound, bound)


def _reference(x, ws_w, wd_w, w_w, v_w, bias_mtx):
    f1 = (x @ ws_w.T) @ v_w.T
    f2 = (x @ wd_w.T) @ v_w.T
    f = jnp.tanh(f1 + f2.T)
    if bias_mtx is not None:
        f = f + bias_mtx
    coef = jax.nn.softmax(f, axis=-1)
    return jnp.tanh((coef @ x) @ w_w.T)


if __name__ == "__main__":
    n_node, in_dim = 64, 32
    out_dim = in_dim  # required by the module's own forward (v is Linear(in_dim, 1))

    key = jax.random.PRNGKey(0)
    kx, kws, kwd, kw, kv, ka, kb = jax.random.split(key, 6 + 1)

    x = jax.random.normal(kx, (n_node, in_dim), jnp.float32)
    Ws = _xavier_uniform(kws, (out_dim, in_dim))   # torch layout [out, in]
    Wd = _xavier_uniform(kwd, (out_dim, in_dim))
    W = _xavier_uniform(kw, (out_dim, in_dim))
    V = _xavier_uniform(kv, (1, in_dim))

    # 1) Adjacency-style 0/-1e9 mask with a known upper bound (0.0):
    #    exercises bf16 bias stream + constant-shift softmax + ones-column normalization.
    adj = (jax.random.uniform(ka, (n_node, n_node)) < 0.3) | jnp.eye(n_node, dtype=bool)
    mask = jnp.where(adj, 0.0, -1e9).astype(jnp.float32)
    out_m = jax.block_until_ready(
        adaptive_breadth_func(x, Ws, Wd, W, V, mask, bias_upper_bound=0.0))
    ref_m = _reference(x, Ws, Wd, W, V, mask)
    assert out_m.shape == (n_node, out_dim)
    # bf16 MXU operands / bias stream / (v6e+v7x) bf16 tanh-exp chain -> loose tolerance.
    assert jnp.allclose(out_m, ref_m, atol=5e-2, rtol=5e-2), "mismatch (masked bias)"

    # 2) Dense small bias without a known bound: per-row-max fallback, f32 elementwise
    #    chain for a tight check (bf16 only for the streamed bias + MXU operands).
    bias = jax.random.normal(kb, (n_node, n_node), jnp.float32) * 0.1
    out_b = jax.block_until_ready(
        adaptive_breadth_func(x, Ws, Wd, W, V, bias, compute_dtype=jnp.float32))
    ref_b = _reference(x, Ws, Wd, W, V, bias)
    assert jnp.allclose(out_b, ref_b, atol=2e-2, rtol=2e-2), "mismatch (dense bias)"

    # 3) No bias (no n^2 stream at all; constant-shift softmax).
    out_nb = jax.block_until_ready(adaptive_breadth_func(x, Ws, Wd, W, V, None))
    ref_nb = _reference(x, Ws, Wd, W, V, None)
    assert jnp.allclose(out_nb, ref_nb, atol=5e-2, rtol=5e-2), "mismatch (no bias)"

    print("KERNEL_OK")
</pallas_src>

<mosaic_0001>
module attributes {stable_mosaic.version = 11 : i64} {
  func.func @kernel(%arg0: i32, %arg1: memref<64x1xf32, #tpu.memory_space<vmem>>, %arg2: memref<1x64xf32, #tpu.memory_space<vmem>>, %arg3: memref<32x64xbf16, #tpu.memory_space<vmem>>, %arg4: memref<64x128xbf16, #tpu.memory_space<vmem>>, %arg5: memref<32x128xf32, #tpu.memory_space<vmem>>) attributes {dimension_semantics = [#tpu.dimension_semantics<parallel>], iteration_bounds = array<i64: 2>, scalar_prefetch = 0 : i64, scratch_operands = 0 : i64, tpu.core_type = #tpu.core_type<tc>, window_params = [{pipeline_mode = #tpu.pipeline_mode<synchronous>, transform_indices = @transform_0, window_bounds = array<i64: 64, 1>}, {pipeline_mode = #tpu.pipeline_mode<synchronous>, transform_indices = @transform_1, window_bounds = array<i64: 1, 64>}, {transform_indices = @transform_2, window_bounds = array<i64: 32, 64>}, {pipeline_mode = #tpu.pipeline_mode<synchronous>, transform_indices = @transform_3, window_bounds = array<i64: 64, 128>}, {transform_indices = @transform_4, window_bounds = array<i64: 32, 128>}]} {
    %c32_i32 = arith.constant 32 : i32
    %0 = arith.muli %arg0, %c32_i32 : i32
    %1 = tpu.assume_multiple %0, 8 : i32
    %2 = arith.index_cast %1 : i32 to index
    %c0 = arith.constant 0 : index
    %3 = vector.load %arg1[%2, %c0] : memref<64x1xf32, #tpu.memory_space<vmem>>, vector<32x1xf32>
    %c0_0 = arith.constant 0 : index
    %c0_1 = arith.constant 0 : index
    %4 = vector.load %arg2[%c0_0, %c0_1] : memref<1x64xf32, #tpu.memory_space<vmem>>, vector<1x64xf32>
    %5 = vector.broadcast %3 : vector<32x1xf32> to vector<32x64xf32>
    %6 = vector.broadcast %4 : vector<1x64xf32> to vector<32x64xf32>
    %7 = arith.addf %5, %6 : vector<32x64xf32>
    %8 = math.tanh %7 : vector<32x64xf32>
    %c0_2 = arith.constant 0 : index
    %c0_3 = arith.constant 0 : index
    %9 = vector.load %arg3[%c0_2, %c0_3] : memref<32x64xbf16, #tpu.memory_space<vmem>>, vector<32x64xbf16>
    %10 = arith.extf %9 : vector<32x64xbf16> to vector<32x64xf32>
    %11 = arith.addf %8, %10 : vector<32x64xf32>
    %cst = arith.constant 1.000000e+00 : f32
    %12 = vector.broadcast %cst : f32 to vector<32x64xf32>
    %13 = arith.subf %11, %12 : vector<32x64xf32>
    %14 = math.exp %13 : vector<32x64xf32>
    %15 = arith.truncf %14 : vector<32x64xf32> to vector<32x64xbf16>
    %c0_4 = arith.constant 0 : index
    %c0_5 = arith.constant 0 : index
    %16 = vector.load %arg4[%c0_4, %c0_5] : memref<64x128xbf16, #tpu.memory_space<vmem>>, vector<64x128xbf16>
    %cst_6 = arith.constant dense<0.000000e+00> : vector<32x128xf32>
    %17 = tpu.matmul %15, %16, %cst_6 {dimension_numbers = #tpu.dot_dimension_numbers<[1], [0], [0], [1], [0, 0, 1, 1], [], []>} : vector<32x64xbf16>, vector<64x128xbf16>, vector<32x128xf32> -> vector<32x128xf32>
    %18 = vector.extract_strided_slice %17 {offsets = [0, 32], sizes = [32, 1], strides = [1, 1]} : vector<32x128xf32> to vector<32x1xf32>
    %19 = tpu.reciprocal %18 {approx = true} : vector<32x1xf32> -> vector<32x1xf32>
    %20 = vector.broadcast %19 : vector<32x1xf32> to vector<32x128xf32>
    %21 = arith.mulf %17, %20 : vector<32x128xf32>
    %22 = math.tanh %21 : vector<32x128xf32>
    %c0_7 = arith.constant 0 : index
    %c0_8 = arith.constant 0 : index
    %23 = vector.load %arg5[%c0_7, %c0_8] : memref<32x128xf32, #tpu.memory_space<vmem>>, vector<32x128xf32>
    tpu.vector_store %arg5[%c0_7, %c0_8], %22 {strides = array<i32>} : memref<32x128xf32, #tpu.memory_space<vmem>>, vector<32x128xf32>,
    return
  }
  func.func @transform_0(%arg0: i32) -> (i32, i32) {
    %c0_i32 = arith.constant 0 : i32
    %c0_i32_0 = arith.constant 0 : i32
    %c0_i32_1 = arith.constant 0 : i32
    return %c0_i32, %c0_i32_0 : i32, i32
  }
  func.func @transform_1(%arg0: i32) -> (i32, i32) {
    %c0_i32 = arith.constant 0 : i32
    %c0_i32_0 = arith.constant 0 : i32
    %c0_i32_1 = arith.constant 0 : i32
    return %c0_i32, %c0_i32_0 : i32, i32
  }
  func.func @transform_2(%arg0: i32) -> (i32, i32) {
    %c0_i32 = arith.constant 0 : i32
    %c0_i32_0 = arith.constant 0 : i32
    return %arg0, %c0_i32 : i32, i32
  }
  func.func @transform_3(%arg0: i32) -> (i32, i32) {
    %c0_i32 = arith.constant 0 : i32
    %c0_i32_0 = arith.constant 0 : i32
    %c0_i32_1 = arith.constant 0 : i32
    return %c0_i32, %c0_i32_0 : i32, i32
  }
  func.func @transform_4(%arg0: i32) -> (i32, i32) {
    %c0_i32 = arith.constant 0 : i32
    %c0_i32_0 = arith.constant 0 : i32
    return %arg0, %c0_i32 : i32, i32
  }
}

</mosaic_0001>

<llo_original>
// kernel: tpu_custom_call.1
$region0: #{tpu_custom_call.1}
  #allocation0 [shape = 'u32[]', space=smem, size = 0x4, offset = 0x4, fixed_abs, tag = 'smem constant byte address 0x4 - core index']
  #allocation1 [shape = 'u32[144,128]{1,0:T(1,128)}', space=vmem, size = 0x12000, scoped, tag = 'internal scratch']
  %s0 = inlined_call_operand.vmem [shape: f32[64,1], index: 0, kind: input, shape index: {}]
  %s1 = inlined_call_operand.vmem [shape: f32[1,64], index: 1, kind: input, shape index: {}]
  %s2 = inlined_call_operand.vmem [shape: bf16[64,64], index: 2, kind: input, shape index: {}]
  %s3 = inlined_call_operand.vmem [shape: bf16[64,128], index: 3, kind: input, shape index: {}]
  %s4 = inlined_call_operand.hbm [shape: f32[64,128], index: 4, kind: output, shape index: {}]
  %s5 = sld [smem:[#allocation0]]
  $region49: #{tpu_custom_call.1} parent=0
    _
  %s7 = ssub.s32 1, %s5
  %s8 = scalar_select 0, %s7, %s5
  $region1: #{tpu_custom_call.1} parent=0
    #allocation2 [shape = 'u8[32768]{0}', space=vmem, size = 0x8000, scoped, tag = 'output window, operand 0']
    #allocation3 [shape = 's32[2]{0}', space=sflag, size = 0x8, scoped, tag = 'scoped memory for tpu_custom_call.1']
    %9 = vsyncpa [#allocation3], 0
    %s10 = scalar_lea.sflag [#allocation3], 1
    %11 = vsyncpa %s10, 0
    loop: start=0, step=1, limit=4
    $region2: #{tpu_custom_call.1} parent=1 // loop_pre_header
      _
    $region3: #{tpu_custom_call.1} parent=1 // loop_header
      %s13 = sphi 0, %s17
      %p14 = scmp.ge.s32.totalorder %s13, 4
      %s21 = sphi 0, %s21
      %s23 = sphi 0, %s21
      %s24 = sphi 0, %s23
      %s38 = sphi 0, %s24
      %s42 = sphi 0, %s42
      %s44 = sphi 0, %s42
      %s45 = sphi 0, %s44
      %s59 = sphi 0, %s45
      %s65 = sphi 0, %s67
      %s68 = sphi 0, %s65
      %s69 = sphi 0, %s68
      %s85 = sphi 0, %s69
      %s89 = sphi 0, %s89
      %s91 = sphi 0, %s89
      %s92 = sphi 0, %s91
      %s106 = sphi 0, %s92
      %s112 = sphi 0, %s114
      %s115 = sphi 0, %s112
      %s116 = sphi 0, %s115
      %s132 = sphi 0, %s116
    $region4: #{tpu_custom_call.1} parent=1 // loop_header_branch
      %16 = sbr.rel (%p14) target = $region8
    $region5: #{tpu_custom_call.1} parent=1 // loop_body
      %s18 = ssub.s32 %s13, 1
      %s19 = ssub.s32 %s13, 2
      %s20 = sadd.s32 %s13, 1
      %s22 = sadd.s32 %s21, 1
      %p25 = scmp.eq.s32.totalorder %s13, 1
      %p26 = scmp.ne.s32.totalorder %s21, %s23
      %p27 = scmp.eq.s32.totalorder %s13, 0
      %p28 = por %p26, %p27
      %p29 = scmp.ne.s32.totalorder %s21, %s23
      %p30 = scmp.eq.s32.totalorder %s18, 1
      %p31 = por %p29, %p30
      %p32 = scmp.ne.s32.totalorder %s23, %s24
      %p33 = scmp.eq.s32.totalorder %s18, 0
      %p34 = por %p32, %p33
      %p35 = scmp.ne.s32.totalorder %s23, %s24
      %p36 = scmp.eq.s32.totalorder %s19, 1
      %p37 = por %p35, %p36
      %p39 = scmp.ne.s32.totalorder %s24, %s38
      %p40 = scmp.eq.s32.totalorder %s19, 0
      %p41 = por %p39, %p40
      %s43 = sadd.s32 %s42, 1
      %p46 = scmp.eq.s32.totalorder %s13, 1
      %p47 = scmp.ne.s32.totalorder %s42, %s44
      %p48 = scmp.eq.s32.totalorder %s13, 0
      %p49 = por %p47, %p48
      %p50 = scmp.ne.s32.totalorder %s42, %s44
      %p51 = scmp.eq.s32.totalorder %s18, 1
      %p52 = por %p50, %p51
      %p53 = scmp.ne.s32.totalorder %s44, %s45
      %p54 = scmp.eq.s32.totalorder %s18, 0
      %p55 = por %p53, %p54
      %p56 = scmp.ne.s32.totalorder %s44, %s45
      %p57 = scmp.eq.s32.totalorder %s19, 1
      %p58 = por %p56, %p57
      %p60 = scmp.ne.s32.totalorder %s45, %s59
      %p61 = scmp.eq.s32.totalorder %s19, 0
      %p62 = por %p60, %p61
      %s63 = ssub.s32 %s13, %s20
      %p64 = scmp.eq.s32.totalorder %s63, 0
      %s66 = sadd.s32 %s65, 1
      %s67 = scalar_select %p64, %s65, %s66
      %p70 = pneg %p64
      %p71 = scmp.eq.s32.totalorder %s13, 1
      %p72 = por %p70, %p71
      %p73 = scmp.ne.s32.totalorder %s65, %s68
      %p74 = scmp.eq.s32.totalorder %s13, 0
      %p75 = por %p73, %p74
      %p76 = scmp.ne.s32.totalorder %s65, %s68
      %p77 = scmp.eq.s32.totalorder %s18, 1
      %p78 = por %p76, %p77
      %p79 = scmp.ne.s32.totalorder %s68, %s69
      %p80 = scmp.eq.s32.totalorder %s18, 0
      %p81 = por %p79, %p80
      %p82 = scmp.ne.s32.totalorder %s68, %s69
      %p83 = scmp.eq.s32.totalorder %s19, 1
      %p84 = por %p82, %p83
      %p86 = scmp.ne.s32.totalorder %s69, %s85
      %p87 = scmp.eq.s32.totalorder %s19, 0
      %p88 = por %p86, %p87
      %s90 = sadd.s32 %s89, 1
      %p93 = scmp.eq.s32.totalorder %s13, 1
      %p94 = scmp.ne.s32.totalorder %s89, %s91
      %p95 = scmp.eq.s32.totalorder %s13, 0
      %p96 = por %p94, %p95
      %p97 = scmp.ne.s32.totalorder %s89, %s91
      %p98 = scmp.eq.s32.totalorder %s18, 1
      %p99 = por %p97, %p98
      %p100 = scmp.ne.s32.totalorder %s91, %s92
      %p101 = scmp.eq.s32.totalorder %s18, 0
      %p102 = por %p100, %p101
      %p103 = scmp.ne.s32.totalorder %s91, %s92
      %p104 = scmp.eq.s32.totalorder %s19, 1
      %p105 = por %p103, %p104
      %p107 = scmp.ne.s32.totalorder %s92, %s106
      %p108 = scmp.eq.s32.totalorder %s19, 0
      %p109 = por %p107, %p108
      %s110 = ssub.s32 %s13, %s20
      %p111 = scmp.eq.s32.totalorder %s110, 0
      %s113 = sadd.s32 %s112, 1
      %s114 = scalar_select %p111, %s112, %s113
      %p117 = pneg %p111
      %p118 = scmp.eq.s32.totalorder %s13, 1
      %p119 = por %p117, %p118
      %p120 = scmp.ne.s32.totalorder %s112, %s115
      %p121 = scmp.eq.s32.totalorder %s13, 0
      %p122 = por %p120, %p121
      %p123 = scmp.ne.s32.totalorder %s112, %s115
      %p124 = scmp.eq.s32.totalorder %s18, 1
      %p125 = por %p123, %p124
      %p126 = scmp.ne.s32.totalorder %s115, %s116
      %p127 = scmp.eq.s32.totalorder %s18, 0
      %p128 = por %p126, %p127
      %p129 = scmp.ne.s32.totalorder %s115, %s116
      %p130 = scmp.eq.s32.totalorder %s19, 1
      %p131 = por %p129, %p130
      %p133 = scmp.ne.s32.totalorder %s116, %s132
      %p134 = scmp.eq.s32.totalorder %s19, 0
      %p135 = por %p133, %p134
      %p136 = scmp.le.s32.totalorder 1, %s13
      %p137 = scmp.lt.s32.totalorder %s13, 3
      %p138 = pnand %p136, %p137
      %p139 = pneg %p138
      // Predicated region
      $region9: #{tpu_custom_call.1} parent=5 // pred_check
        _
      $region10: #{tpu_custom_call.1} parent=5 // pred_check_branch
        %141 = sbr.rel (%p138) target = $region12
      $region11: #{tpu_custom_call.1} parent=5 // pred_region
        %s142 = ssub.s32 %s13, 1
        // Predicated region
        $region13: #{tpu_custom_call.1} parent=11 // pred_check
          %p143 = pneg %p34
        $region14: #{tpu_custom_call.1} parent=11 // pred_check_branch
          %145 = sbr.rel (%p143) target = $region16
        $region15: #{tpu_custom_call.1} parent=11 // pred_region
          _
        $region16: #{tpu_custom_call.1} parent=11 // pred_fallthru
          _
        // Predicated region
        $region17: #{tpu_custom_call.1} parent=11 // pred_check
          %p146 = pneg %p55
        $region18: #{tpu_custom_call.1} parent=11 // pred_check_branch
          %148 = sbr.rel (%p146) target = $region20
        $region19: #{tpu_custom_call.1} parent=11 // pred_region
          _
        $region20: #{tpu_custom_call.1} parent=11 // pred_fallthru
          _
        // Predicated region
        $region21: #{tpu_custom_call.1} parent=11 // pred_check
          %p149 = pneg %p102
        $region22: #{tpu_custom_call.1} parent=11 // pred_check_branch
          %151 = sbr.rel (%p149) target = $region24
        $region23: #{tpu_custom_call.1} parent=11 // pred_region
          _
        $region24: #{tpu_custom_call.1} parent=11 // pred_fallthru
          _
      $region12: #{tpu_custom_call.1} parent=5 // pred_fallthru
        _
      %p152 = scmp.lt.s32.totalorder %s13, 2
      // Predicated region
      $region25: #{tpu_custom_call.1} parent=5 // pred_check
        %p153 = pneg %p152
      $region26: #{tpu_custom_call.1} parent=5 // pred_check_branch
        %155 = sbr.rel (%p153) target = $region28
      $region27: #{tpu_custom_call.1} parent=5 // pred_region
        // Predicated region
        $region29: #{tpu_custom_call.1} parent=27 // pred_check
          %p156 = pneg %p75
        $region30: #{tpu_custom_call.1} parent=27 // pred_check_branch
          %158 = sbr.rel (%p156) target = $region32
        $region31: #{tpu_custom_call.1} parent=27 // pred_region
          %s159 = smul.u32 4, %s13
          %p160 = scmp.lt.s32.totalorder %s159, 7
          %s161 = scalar_select %p160, %s159, 7
          %s162 = smul.addr %s161, 4
          %s163 = scalar_lea.vmem %s2, %s162
          %s164 = smul.u32 4, %s13
        $region32: #{tpu_custom_call.1} parent=27 // pred_fallthru
          _
      $region28: #{tpu_custom_call.1} parent=5 // pred_fallthru
        _
      %p165 = scmp.le.s32.totalorder 1, %s13
      %p166 = scmp.lt.s32.totalorder %s13, 3
      %p167 = pnand %p165, %p166
      %p168 = pneg %p167
      // Predicated region
      $region33: #{tpu_custom_call.1} parent=5 // pred_check
        _
      $region34: #{tpu_custom_call.1} parent=5 // pred_check_branch
        %170 = sbr.rel (%p167) target = $region36
      $region35: #{tpu_custom_call.1} parent=5 // pred_region
        %s171 = ssub.s32 %s13, 1
        %p172 = pneg %p34
        %p173 = pneg %p31
        %p174 = pneg %p55
        %p175 = pneg %p52
        %s176 = smul.u32 4, %s18
        %p177 = scmp.lt.s32.totalorder %s176, 7
        %s178 = scalar_select %p177, %s176, 7
        %s179 = smul.addr %s178, 4
        %s180 = scalar_lea.vmem %s2, %s179
        %p181 = pneg %p81
        %p182 = pneg %p78
        %p183 = pneg %p102
        %p184 = pneg %p99
        %p185 = pneg %p128
        %p186 = pneg %p125
        %s187 = sand.u32 %s115, 1
        %s188 = scalar_lea.sflag [#allocation3], %s187
        %s189 = sand.u32 %s115, 1
        %s190 = smul.addr %s189, 32
        %s191 = scalar_lea.vmem [#allocation2], %s190
        %s192 = smul.u32 4, %s18
        %p193 = scmp.lt.s32.totalorder %s192, 7
        %s194 = scalar_select %p193, %s192, 7
        %s195 = smul.addr %s194, 4
        %s196 = scalar_lea.vmem %s2, %s195
        %s197 = smul.u32 4, %s18
        %s198 = smul.u32 4, %s18
        %s200 = smul.u32 %s18, 32
        %s201 = scalar_lea.vmem %s0, %s200
        %v202 = vld [vmem:[%s201] sm:$0xff]
        %v203 = vld [vmem:[%s201 + $0x8] sm:$0xff]
        %v204 = vld [vmem:[%s201 + $0x10] sm:$0xff]
        %v205 = vld [vmem:[%s201 + $0x18] sm:$0xff]
        %v206 = vld [vmem:[%s1] sm:$0x1]
        %208 = vset.pattern.permute.xlu0 0
        %209 = vperm.xlu0 %208, %v202
        %v210 = vpop.permute.xlu0 %209
        %213 = vset.pattern.permute.xlu0 0
        %214 = vperm.xlu0 %213, %v203
        %v215 = vpop.permute.xlu0 %214
        %218 = vset.pattern.permute.xlu0 0
        %219 = vperm.xlu0 %218, %v204
        %v220 = vpop.permute.xlu0 %219
        %223 = vset.pattern.permute.xlu0 0
        %224 = vperm.xlu0 %223, %v205
        %v225 = vpop.permute.xlu0 %224
        %v228 = vlaneseq
        %v229 = vshrl.u32 %v228, 7
        %v230 = vsub.s32 0, %v229
        %v231 = vrot.slane %v206, %v230
        %v233 = vadd.f32 %v210, %v231
        %v234 = vadd.f32 %v215, %v231
        %v235 = vadd.f32 %v220, %v231
        %v236 = vadd.f32 %v225, %v231
        %v237 = vtanh.pop %v233
        %v238 = vtanh.pop %v234
        %v239 = vtanh.pop %v235
        %v240 = vtanh.pop %v236
        %v241 = vld [vmem:[%s196] sm:$0xf]
        %v242 = vld [vmem:[%s196 + $0x4] sm:$0xf]
        %v243 = vld [vmem:[%s196 + $0x8] sm:$0xf]
        %v244 = vld [vmem:[%s196 + $0xc] sm:$0xf]
        %v245 = vunpack.c.l.bf16 %v241
        %v246 = vunpack.c.l.bf16 %v242
        %v247 = vunpack.c.l.bf16 %v243
        %v248 = vunpack.c.l.bf16 %v244
        %v249 = vadd.f32 %v237, %v245
        %v250 = vadd.f32 %v238, %v246
        %v251 = vadd.f32 %v239, %v247
        %v252 = vadd.f32 %v240, %v248
        %v253 = vsub.f32 %v249, 1.0
        %v254 = vsub.f32 %v250, 1.0
        %v255 = vsub.f32 %v251, 1.0
        %v256 = vsub.f32 %v252, 1.0
        %v257 = vmul.f32 %v253, 1.442695
        %v258 = vpow.pop %v257
        %v259 = vmul.f32 %v254, 1.442695
        %v260 = vpow.pop %v259
        %v261 = vmul.f32 %v255, 1.442695
        %v262 = vpow.pop %v261
        %v263 = vmul.f32 %v256, 1.442695
        %v264 = vpow.pop %v263
        %v265 = vpack.c.bf16 %v260, %v258
        %v266 = vpack.c.bf16 %v264, %v262
        %v267 = vld [vmem:[%s3] sm:$0xf]
        %v268 = vld [vmem:[%s3 + $0x4] sm:$0xf]
        %v269 = vld [vmem:[%s3 + $0x8] sm:$0xf]
        %v270 = vld [vmem:[%s3 + $0xc] sm:$0xf]
        %v271 = vld [vmem:[%s3 + $0x10] sm:$0xf]
        %v272 = vld [vmem:[%s3 + $0x14] sm:$0xf]
        %v273 = vld [vmem:[%s3 + $0x18] sm:$0xf]
        %v274 = vld [vmem:[%s3 + $0x1c] sm:$0xf]
        %v283 = vunpack.c.l.b16 %v267
        %v284 = vunpack.c.l.b16 %v268
        %v285 = vunpack.c.l.b16 %v269
        %v286 = vunpack.c.l.b16 %v270
        %v287 = vunpack.c.l.b16 %v271
        %v288 = vunpack.c.l.b16 %v272
        %v289 = vunpack.c.l.b16 %v273
        %v290 = vunpack.c.l.b16 %v274
        %v291 = vpack.c.b16 %v284, %v283
        %v292 = vpack.c.b16 %v286, %v285
        %v293 = vpack.c.b16 %v288, %v287
        %v294 = vpack.c.b16 %v290, %v289
        %vm299 = vcmask 523264
        %v301 = vsel %vm299, %v265, 0
        %v304 = vsel %vm299, %v266, 0
        %306 = vmatprep.subr.bf16.mxu0 0
        %307 = vmatpush1.bf16.msra.mxu0 %v291
        %308 = vmatprep.subr.bf16.mxu0 0
        %309 = vmatpush1.bf16.msra.mxu0 %v292
        %310 = vmatprep.subr.bf16.mxu0 0
        %311 = vmatpush1.bf16.msra.mxu0 %v293
        %312 = vmatprep.subr.bf16.mxu0 0
        %313 = vmatpush1.bf16.msra.mxu0 %v294
        %314 = vmatprep.subr.bf16.mxu0 0
        %315 = vmatpush1.bf16.msra.mxu0 0
        %316 = vmatprep.subr.bf16.mxu0 0
        %317 = vmatpush1.bf16.msra.mxu0 0
        %318 = vmatprep.subr.bf16.mxu0 0
        %319 = vmatpush1.bf16.msra.mxu0 0
        %320 = vmatprep.subr.bf16.mxu0 0
        %321 = vmatpush1.bf16.msra.mxu0 0
        %322 = vmatprep.subr.bf16.mxu0 0
        %323 = vmatpush1.bf16.msra.mxu0 0
        %324 = vmatprep.subr.bf16.mxu0 0
        %325 = vmatpush1.bf16.msra.mxu0 0
        %326 = vmatprep.subr.bf16.mxu0 0
        %327 = vmatpush1.bf16.msra.mxu0 0
        %328 = vmatprep.subr.bf16.mxu0 0
        %329 = vmatpush1.bf16.msra.mxu0 0
        %330 = vmatprep.subr.bf16.mxu0 0
        %331 = vmatpush1.bf16.msra.mxu0 0
        %332 = vmatprep.subr.bf16.mxu0 0
        %333 = vmatpush1.bf16.msra.mxu0 0
        %334 = vmatprep.subr.bf16.mxu0 0
        %335 = vmatpush1.bf16.msra.mxu0 0
        %336 = vmatprep.subr.bf16.mxu0 0
        %337 = vmatpush1.bf16.msra.mxu0 0
        %338 = vmatprep.mubr.bf16.mxu0 0
        %339 = vmatmul.mubr.bf16.gmra.mrb[0].mxu0 %v301
        %v340 = vpop.f32.mrb[0].mxu0
        %v341 = vadd.f32 0.0, %v340
        %v342 = vpop.f32.mrb[0].mxu0
        %v343 = vpop.f32.mrb[0].mxu0
        %v344 = vadd.f32 0.0, %v343
        %v345 = vpop.f32.mrb[0].mxu0
        %346 = vmatprep.mubr.bf16.mxu0 0
        %347 = vmatmul.mubr.bf16.gmra.mrb[0].mxu0 %v304
        %v348 = vpop.f32.mrb[0].mxu0
        %v349 = vadd.f32 0.0, %v348
        %v350 = vpop.f32.mrb[0].mxu0
        %v351 = vpop.f32.mrb[0].mxu0
        %v352 = vadd.f32 0.0, %v351
        %v353 = vpop.f32.mrb[0].mxu0
        %354 = vdwg.mxu0
        %v355 = vrcp.pop %v341
        %v356 = vrcp.pop %v344
        %v357 = vrcp.pop %v349
        %v358 = vrcp.pop %v352
        %360 = vset.pattern.permute.xlu0 32
        %361 = vperm.xlu0 %360, %v355
        %v362 = vpop.permute.xlu0 %361
        %365 = vset.pattern.permute.xlu0 32
        %366 = vperm.xlu0 %365, %v356
        %v367 = vpop.permute.xlu0 %366
        %370 = vset.pattern.permute.xlu0 32
        %371 = vperm.xlu0 %370, %v357
        %v372 = vpop.permute.xlu0 %371
        %375 = vset.pattern.permute.xlu0 32
        %376 = vperm.xlu0 %375, %v358
        %v377 = vpop.permute.xlu0 %376
        %v379 = vmul.f32 %v341, %v362
        %v380 = vmul.f32 %v344, %v367
        %v381 = vmul.f32 %v349, %v372
        %v382 = vmul.f32 %v352, %v377
        %v383 = vtanh.pop %v379
        %v384 = vtanh.pop %v380
        %v385 = vtanh.pop %v381
        %v386 = vtanh.pop %v382
        %387 = vst [vmem:[%s191] sm:$0xff] %v383
        %388 = vst [vmem:[%s191 + $0x8] sm:$0xff] %v384
        %389 = vst [vmem:[%s191 + $0x10] sm:$0xff] %v385
        %390 = vst [vmem:[%s191 + $0x18] sm:$0xff] %v386
        %s391 = sand.u32 %s115, 1
        %s392 = scalar_lea.sflag [#allocation3], %s391
        %s393 = sand.u32 %s115, 1
        %s394 = smul.addr %s393, 32
        %s395 = scalar_lea.vmem [#allocation2], %s394
        // Predicated region
        $region37: #{tpu_custom_call.1} parent=35 // pred_check
          %p396 = pneg %p125
        $region38: #{tpu_custom_call.1} parent=35 // pred_check_branch
          %398 = sbr.rel (%p396) target = $region40
        $region39: #{tpu_custom_call.1} parent=35 // pred_region
          %s399 = smul.u32 4, %s18
          %s401 = ssub.s32 512, 512
          %402 = vsyncadd %s392, %s401
          %s403 = smul.addr %s399, 128
          %s404 = scalar_lea.hbm %s4, %s403
          %s405 = sshll.u32 %s395, 4
          %s406 = int_to_ptr.vmem [resolvable:$true] %s405
          %411 = dma.vmem_to_hbm [thread:$0]  %s406, 512, %s404, %s392, 128, 128, 8
        $region40: #{tpu_custom_call.1} parent=35 // pred_fallthru
          _
      $region36: #{tpu_custom_call.1} parent=5 // pred_fallthru
        _
      %p412 = scmp.le.s32.totalorder 2, %s13
      // Predicated region
      $region41: #{tpu_custom_call.1} parent=5 // pred_check
        %p413 = pneg %p412
      $region42: #{tpu_custom_call.1} parent=5 // pred_check_branch
        %415 = sbr.rel (%p413) target = $region44
      $region43: #{tpu_custom_call.1} parent=5 // pred_region
        %s416 = ssub.s32 %s13, 2
        // Predicated region
        $region45: #{tpu_custom_call.1} parent=43 // pred_check
          %p417 = pneg %p131
        $region46: #{tpu_custom_call.1} parent=43 // pred_check_branch
          %419 = sbr.rel (%p417) target = $region48
        $region47: #{tpu_custom_call.1} parent=43 // pred_region
          %s420 = sand.u32 %s116, 1
          %s421 = scalar_lea.sflag [#allocation3], %s420
          %s422 = sand.u32 %s116, 1
          %s423 = smul.addr %s422, 32
          %s424 = scalar_lea.vmem [#allocation2], %s423
          %425 = dma.done %s421, 512
        $region48: #{tpu_custom_call.1} parent=43 // pred_fallthru
          _
      $region44: #{tpu_custom_call.1} parent=5 // pred_fallthru
        _
    $region6: #{tpu_custom_call.1} parent=1 // loop_footer
      %s17 = sadd.s32 1, %s13
    $region7: #{tpu_custom_call.1} parent=1 // loop_footer_branch
      %12 = sbr.rel target = $region3
    $region8: #{tpu_custom_call.1} parent=1 // loop_exit
      _
    %426 = vsyncpa [#allocation3], 1
    %s427 = scalar_lea.sflag [#allocation3], 1
    %428 = vsyncpa %s427, 1

</llo_original>
